<compile_context>
chip_gen: v6e
topology: v6e:2x2x1
jax: 0.10.0
libtpu: 0.0.40
codegen_flags: <defaults>
</compile_context>

<pallas_src>
import functools

import jax
import jax.numpy as jnp
from jax.experimental import pallas as pl
from jax.experimental.pallas import tpu as pltpu

LANE = 128


def _softmax_last(x):
    m = jnp.max(x, axis=-1, keepdims=True)
    e = jnp.exp(x - m)
    # Exact reciprocal: epilogue runs once per batch tile, cost is negligible,
    # and it keeps tight parity with jax.nn.softmax.
    return e * pl.reciprocal(jnp.sum(e, axis=-1, keepdims=True), approx=False)


def cmba_kernel(x_ref, w1t_ref, b1_ref, w2t_ref, b2_ref,
                out1_ref, out2_ref, sum_acc, max_acc,
                *, hw, tile_hw, ns, num_channels):
    s = pl.program_id(1)
    n_chunks = tile_hw // LANE
    b_tile = sum_acc.shape[0]
    # Small accumulators are carried through the fori_loop in vregs; large ones
    # (big C) read-modify-write the VMEM scratch per chunk instead.
    carry_in_vregs = (b_tile * num_channels) <= 128

    @pl.when(s == 0)
    def _init():
        sum_acc[...] = jnp.zeros_like(sum_acc)
        max_acc[...] = jnp.full_like(max_acc, -jnp.inf)

    def accum_unmasked(lo, hi):
        """Unmasked add/max accumulate of chunks [lo, hi) (trace-time bounds)."""
        n = hi - lo
        if n <= 0:
            return
        if n == 1:
            chunk = x_ref[:, :, lo * LANE:(lo + 1) * LANE]
            sum_acc[...] += chunk
            max_acc[...] = jnp.maximum(max_acc[...], chunk)
            return
        unroll = min(8, n)
        if carry_in_vregs:
            def body(k, carry):
                acc_s, acc_m = carry
                off = pl.multiple_of(k * LANE, LANE)
                chunk = x_ref[:, :, pl.ds(off, LANE)]
                return acc_s + chunk, jnp.maximum(acc_m, chunk)
            acc_s, acc_m = jax.lax.fori_loop(
                lo, hi, body, (sum_acc[...], max_acc[...]), unroll=unroll)
            sum_acc[...] = acc_s
            max_acc[...] = acc_m
        else:
            def body(k, carry):
                off = pl.multiple_of(k * LANE, LANE)
                chunk = x_ref[:, :, pl.ds(off, LANE)]
                sum_acc[...] += chunk
                max_acc[...] = jnp.maximum(max_acc[...], chunk)
                return carry
            jax.lax.fori_loop(lo, hi, body, 0, unroll=unroll)

    # Raggedness is resolved at trace time: hw, tile_hw, ns are Python ints.
    tail_valid = hw - (ns - 1) * tile_hw        # valid elements in last tile
    if tail_valid == tile_hw:
        # HW divides evenly into tiles -> no masking anywhere.
        accum_unmasked(0, n_chunks)
    else:
        if ns > 1:
            @pl.when(s < ns - 1)
            def _full_tiles():
                accum_unmasked(0, n_chunks)

        @pl.when(s == ns - 1)
        def _last_tile():
            n_full = tail_valid // LANE
            accum_unmasked(0, n_full)           # full chunks: unmasked
            rem = tail_valid % LANE
            if rem:
                # Exactly one masked 128-lane chunk per batch tile.
                chunk = x_ref[:, :, n_full * LANE:(n_full + 1) * LANE]
                idx = jax.lax.broadcasted_iota(jnp.int32, chunk.shape, 2)
                valid = idx < rem
                sum_acc[...] += jnp.where(valid, chunk, 0.0)
                max_acc[...] = jnp.maximum(
                    max_acc[...], jnp.where(valid, chunk, -jnp.inf))
            # Chunks entirely past HW are skipped at trace time.

    @pl.when(s == ns - 1)
    def _finalize():
        # Single lane-reduce (XLU) per batch tile.
        pooled_sum = jnp.sum(sum_acc[...], axis=-1)            # [bt, C]
        pooled_max = jnp.max(max_acc[...], axis=-1)            # [bt, C]
        avg = pooled_sum * (1.0 / hw)

        # fc1(avg) + fc1(max)  ==  (avg + max) @ W1^T + 2*b1
        shared = jnp.dot(avg + pooled_max, w1t_ref[...],
                         preferred_element_type=jnp.float32) + 2.0 * b1_ref[...]
        # Both fc2 branches in one matmul ([Cr, 2C] fused weight).
        logits = jnp.dot(shared, w2t_ref[...],
                         preferred_element_type=jnp.float32) + b2_ref[...]
        out1_ref[...] = _softmax_last(logits[:, :num_channels])
        out2_ref[...] = _softmax_last(logits[:, num_channels:])


def _per_generation_budgets():
    """Returns (total x double-buffer budget, vmem_limit cap) in bytes."""
    kind = ""
    try:
        kind = jax.devices()[0].device_kind.lower()
    except Exception:
        pass
    if "v5" in kind:
        return 14 << 20, 112 << 20      # ~7 MiB per x buffer; 128 MiB physical
    if "v7" in kind:
        return 32 << 20, 56 << 20       # 16 MiB per x buffer; 64 MiB physical/TC
    return 32 << 20, 112 << 20          # v6e and default


def cross_modality_branch_attention(x, params, *, max_tile_hw=32768):
    """x: [B, C, H, W] float32 (NCHW). Returns (w1, w2), each [B, C, 1, 1]."""
    B, C, H, W = x.shape
    HW = H * W
    x_flat = x.reshape(B, C, HW)

    # Pad tiny spatial extents up to one lane group (masked in-kernel).
    if HW < LANE:
        x_flat = jnp.pad(x_flat, ((0, 0), (0, 0), (0, LANE - HW)))
    HW_arr = x_flat.shape[-1]

    # Batch tile: output block's second-to-last dim must be a multiple of 8 or
    # the full batch extent.
    b_tile = B if B <= 8 else 8
    c_pad = ((C + 7) // 8) * 8                  # sublane padding inside VMEM

    # Weight prep (pre-transposed; fc2 branches fused along the output dim).
    w1t = params["fc1_w"].T                                        # [C, Cr]
    b1 = params["fc1_b"][None, :]                                  # [1, Cr]
    w2t = jnp.concatenate([params["fc2a_w"].T, params["fc2b_w"].T], axis=1)  # [Cr, 2C]
    b2 = jnp.concatenate([params["fc2a_b"], params["fc2b_b"]])[None, :]      # [1, 2C]
    Cr = w1t.shape[1]

    # --- Per-generation spatial tile sizing --------------------------------
    x_budget_total, vmem_cap = _per_generation_budgets()
    weight_bytes = (C * Cr + Cr + Cr * 2 * C + 2 * C) * 4
    scratch_bytes = 2 * b_tile * c_pad * LANE * 4
    out_bytes = 2 * 2 * b_tile * C * 4          # two outputs, double-buffered
    fixed_bytes = 2 * weight_bytes + scratch_bytes + out_bytes
    x_budget = max(4 << 20, x_budget_total - fixed_bytes)

    hw_cap = max(LANE, (HW_arr // LANE) * LANE)             # never exceed data
    tile_from_budget = (x_budget // (2 * b_tile * c_pad * 4)) // LANE * LANE
    tile_hw = int(max(LANE, min(max_tile_hw, tile_from_budget, hw_cap)))

    grid = (pl.cdiv(B, b_tile), pl.cdiv(HW_arr, tile_hw))
    ns = grid[1]

    est_bytes = 2 * b_tile * c_pad * tile_hw * 4 + fixed_bytes
    vmem_limit = int(min(max(est_bytes + (4 << 20), 32 << 20), vmem_cap))

    kernel = functools.partial(cmba_kernel, hw=HW, tile_hw=tile_hw, ns=ns,
                               num_channels=C)

    out1, out2 = pl.pallas_call(
        kernel,
        out_shape=(
            jax.ShapeDtypeStruct((B, C), jnp.float32),
            jax.ShapeDtypeStruct((B, C), jnp.float32),
        ),
        grid_spec=pltpu.PrefetchScalarGridSpec(
            num_scalar_prefetch=0,
            grid=grid,
            in_specs=[
                pl.BlockSpec((b_tile, C, tile_hw), lambda b, s: (b, 0, s)),
                pl.BlockSpec((C, Cr), lambda b, s: (0, 0)),
                pl.BlockSpec((1, Cr), lambda b, s: (0, 0)),
                pl.BlockSpec((Cr, 2 * C), lambda b, s: (0, 0)),
                pl.BlockSpec((1, 2 * C), lambda b, s: (0, 0)),
            ],
            out_specs=[
                pl.BlockSpec((b_tile, C), lambda b, s: (b, 0)),
                pl.BlockSpec((b_tile, C), lambda b, s: (b, 0)),
            ],
            scratch_shapes=[
                pltpu.VMEM((b_tile, C, LANE), jnp.float32),   # running sum
                pltpu.VMEM((b_tile, C, LANE), jnp.float32),   # running max
            ],
        ),
        compiler_params=pltpu.CompilerParams(
            dimension_semantics=("parallel", "arbitrary"),
            vmem_limit_bytes=vmem_limit,
        ),
    )(x_flat, w1t, b1, w2t, b2)

    return out1.reshape(B, C, 1, 1), out2.reshape(B, C, 1, 1)


def init_params(key, num_channels, reduction_ratio=2):
    cr = num_channels // reduction_ratio
    ks = jax.random.split(key, 6)

    def linear_init(kw, kb, fan_in, fan_out):
        bound = 1.0 / jnp.sqrt(fan_in)
        w = jax.random.uniform(kw, (fan_out, fan_in), jnp.float32, -bound, bound)
        b = jax.random.uniform(kb, (fan_out,), jnp.float32, -bound, bound)
        return w, b

    fc1_w, fc1_b = linear_init(ks[0], ks[1], num_channels, cr)
    fc2a_w, fc2a_b = linear_init(ks[2], ks[3], cr, num_channels)
    fc2b_w, fc2b_b = linear_init(ks[4], ks[5], cr, num_channels)
    return {
        "fc1_w": fc1_w, "fc1_b": fc1_b,
        "fc2a_w": fc2a_w, "fc2a_b": fc2a_b,
        "fc2b_w": fc2b_w, "fc2b_b": fc2b_b,
    }


def reference(x, params):
    B, C, H, W = x.shape
    avg = jnp.mean(x, axis=(2, 3))
    mx = jnp.max(x, axis=(2, 3))
    fc1 = lambda a: a @ params["fc1_w"].T + params["fc1_b"]
    shared = fc1(avg) + fc1(mx)
    l1 = shared @ params["fc2a_w"].T + params["fc2a_b"]
    l2 = shared @ params["fc2b_w"].T + params["fc2b_b"]
    s1 = jax.nn.softmax(l1, axis=-1)
    s2 = jax.nn.softmax(l2, axis=-1)
    return s1.reshape(B, C, 1, 1), s2.reshape(B, C, 1, 1)


if __name__ == "__main__":
    key = jax.random.PRNGKey(0)
    kx1, kp1, kx2, kp2, kx3, kp3 = jax.random.split(key, 6)

    # Case 1: small shapes consistent with the module (HW multiple of 128).
    B, C, H, W = 2, 4, 16, 16
    x1 = jax.random.normal(kx1, (B, C, H, W), dtype=jnp.float32)
    p1 = init_params(kp1, num_channels=C, reduction_ratio=2)
    w1, w2 = cross_modality_branch_attention(x1, p1)
    jax.block_until_ready((w1, w2))
    r1, r2 = reference(x1, p1)
    assert w1.shape == (B, C, 1, 1) and w2.shape == (B, C, 1, 1)
    assert jnp.allclose(w1, r1, atol=1e-5), "branch 1 mismatch (case 1)"
    assert jnp.allclose(w2, r2, atol=1e-5), "branch 2 mismatch (case 1)"

    # Case 2: non-128-aligned spatial size -> multi-step reduction with one
    # masked ragged chunk in the last spatial tile.
    x2 = jax.random.normal(kx2, (3, 8, 20, 20), dtype=jnp.float32)
    p2 = init_params(kp2, num_channels=8, reduction_ratio=2)
    w1b, w2b = cross_modality_branch_attention(x2, p2)
    jax.block_until_ready((w1b, w2b))
    r1b, r2b = reference(x2, p2)
    assert jnp.allclose(w1b, r1b, atol=1e-5), "branch 1 mismatch (case 2)"
    assert jnp.allclose(w2b, r2b, atol=1e-5), "branch 2 mismatch (case 2)"

    # Case 3: ragged batch blocks (B=12 > b_tile=8, B % 8 != 0) together with a
    # ragged spatial tail — locks in that clipped OOB rows never leak garbage.
    x3 = jax.random.normal(kx3, (12, 8, 20, 20), dtype=jnp.float32)
    p3 = init_params(kp3, num_channels=8, reduction_ratio=2)
    w1c, w2c = cross_modality_branch_attention(x3, p3)
    jax.block_until_ready((w1c, w2c))
    r1c, r2c = reference(x3, p3)
    assert jnp.allclose(w1c, r1c, atol=1e-5), "branch 1 mismatch (case 3)"
    assert jnp.allclose(w2c, r2c, atol=1e-5), "branch 2 mismatch (case 3)"

    print("KERNEL_OK")
</pallas_src>

<mosaic_0001>
module attributes {stable_mosaic.version = 11 : i64} {
  func.func @cmba_kernel(%arg0: i32, %arg1: i32, %arg2: memref<2x4x256xf32, #tpu.memory_space<vmem>>, %arg3: memref<4x2xf32, #tpu.memory_space<vmem>>, %arg4: memref<1x2xf32, #tpu.memory_space<vmem>>, %arg5: memref<2x8xf32, #tpu.memory_space<vmem>>, %arg6: memref<1x8xf32, #tpu.memory_space<vmem>>, %arg7: memref<2x4xf32, #tpu.memory_space<vmem>>, %arg8: memref<2x4xf32, #tpu.memory_space<vmem>>, %arg9: memref<2x4x128xf32, #tpu.memory_space<vmem>>, %arg10: memref<2x4x128xf32, #tpu.memory_space<vmem>>) attributes {dimension_semantics = [#tpu.dimension_semantics<parallel>, #tpu.dimension_semantics<arbitrary>], iteration_bounds = array<i64: 1, 1>, scalar_prefetch = 0 : i64, scratch_operands = 2 : i64, tpu.core_type = #tpu.core_type<tc>, window_params = [{transform_indices = @transform_0, window_bounds = array<i64: 2, 4, 256>}, {pipeline_mode = #tpu.pipeline_mode<synchronous>, transform_indices = @transform_1, window_bounds = array<i64: 4, 2>}, {pipeline_mode = #tpu.pipeline_mode<synchronous>, transform_indices = @transform_2, window_bounds = array<i64: 1, 2>}, {pipeline_mode = #tpu.pipeline_mode<synchronous>, transform_indices = @transform_3, window_bounds = array<i64: 2, 8>}, {pipeline_mode = #tpu.pipeline_mode<synchronous>, transform_indices = @transform_4, window_bounds = array<i64: 1, 8>}, {transform_indices = @transform_5, window_bounds = array<i64: 2, 4>}, {transform_indices = @transform_6, window_bounds = array<i64: 2, 4>}]} {
    %c0_i32 = arith.constant 0 : i32
    %0 = arith.cmpi eq, %arg1, %c0_i32 : i32
    %1 = arith.extui %0 : i1 to i32
    %c0_i32_0 = arith.constant 0 : i32
    %2 = arith.cmpi ne, %1, %c0_i32_0 : i32
    scf.if %2 {
      %cst = arith.constant 0.000000e+00 : f32
      %22 = vector.broadcast %cst : f32 to vector<2x4x128xf32>
      %c0_20 = arith.constant 0 : index
      %c0_21 = arith.constant 0 : index
      %c0_22 = arith.constant 0 : index
      %23 = vector.load %arg9[%c0_20, %c0_21, %c0_22] : memref<2x4x128xf32, #tpu.memory_space<vmem>>, vector<2x4x128xf32>
      tpu.vector_store %arg9[%c0_20, %c0_21, %c0_22], %22 {strides = array<i32>} : memref<2x4x128xf32, #tpu.memory_space<vmem>>, vector<2x4x128xf32>,
      %cst_23 = arith.constant 0xFF800000 : f32
      %24 = vector.broadcast %cst_23 : f32 to vector<2x4x128xf32>
      %c0_24 = arith.constant 0 : index
      %c0_25 = arith.constant 0 : index
      %c0_26 = arith.constant 0 : index
      %25 = vector.load %arg10[%c0_24, %c0_25, %c0_26] : memref<2x4x128xf32, #tpu.memory_space<vmem>>, vector<2x4x128xf32>
      tpu.vector_store %arg10[%c0_24, %c0_25, %c0_26], %24 {strides = array<i32>} : memref<2x4x128xf32, #tpu.memory_space<vmem>>, vector<2x4x128xf32>,
    } else {
    }
    %c0 = arith.constant 0 : index
    %c0_1 = arith.constant 0 : index
    %c0_2 = arith.constant 0 : index
    %3 = vector.load %arg9[%c0, %c0_1, %c0_2] : memref<2x4x128xf32, #tpu.memory_space<vmem>>, vector<2x4x128xf32>
    %c0_3 = arith.constant 0 : index
    %c0_4 = arith.constant 0 : index
    %c0_5 = arith.constant 0 : index
    %4 = vector.load %arg10[%c0_3, %c0_4, %c0_5] : memref<2x4x128xf32, #tpu.memory_space<vmem>>, vector<2x4x128xf32>
    %c0_i32_6 = arith.constant 0 : i32
    %c128_i32 = arith.constant 128 : i32
    %5 = arith.muli %c0_i32_6, %c128_i32 : i32
    %6 = tpu.assume_multiple %5, 128 : i32
    %c0_7 = arith.constant 0 : index
    %c0_8 = arith.constant 0 : index
    %7 = arith.index_cast %6 : i32 to index
    %8 = vector.load %arg2[%c0_7, %c0_8, %7] : memref<2x4x256xf32, #tpu.memory_space<vmem>>, vector<2x4x128xf32>
    %9 = arith.addf %3, %8 : vector<2x4x128xf32>
    %10 = arith.maximumf %4, %8 : vector<2x4x128xf32>
    %c1_i32 = arith.constant 1 : i32
    %c128_i32_9 = arith.constant 128 : i32
    %11 = arith.muli %c1_i32, %c128_i32_9 : i32
    %12 = tpu.assume_multiple %11, 128 : i32
    %c0_10 = arith.constant 0 : index
    %c0_11 = arith.constant 0 : index
    %13 = arith.index_cast %12 : i32 to index
    %14 = vector.load %arg2[%c0_10, %c0_11, %13] : memref<2x4x256xf32, #tpu.memory_space<vmem>>, vector<2x4x128xf32>
    %15 = arith.addf %9, %14 : vector<2x4x128xf32>
    %16 = arith.maximumf %10, %14 : vector<2x4x128xf32>
    %c2_i32 = arith.constant 2 : i32
    %c0_12 = arith.constant 0 : index
    %c0_13 = arith.constant 0 : index
    %c0_14 = arith.constant 0 : index
    %17 = vector.load %arg9[%c0_12, %c0_13, %c0_14] : memref<2x4x128xf32, #tpu.memory_space<vmem>>, vector<2x4x128xf32>
    tpu.vector_store %arg9[%c0_12, %c0_13, %c0_14], %15 {strides = array<i32>} : memref<2x4x128xf32, #tpu.memory_space<vmem>>, vector<2x4x128xf32>,
    %c0_15 = arith.constant 0 : index
    %c0_16 = arith.constant 0 : index
    %c0_17 = arith.constant 0 : index
    %18 = vector.load %arg10[%c0_15, %c0_16, %c0_17] : memref<2x4x128xf32, #tpu.memory_space<vmem>>, vector<2x4x128xf32>
    tpu.vector_store %arg10[%c0_15, %c0_16, %c0_17], %16 {strides = array<i32>} : memref<2x4x128xf32, #tpu.memory_space<vmem>>, vector<2x4x128xf32>,
    %c0_i32_18 = arith.constant 0 : i32
    %19 = arith.cmpi eq, %arg1, %c0_i32_18 : i32
    %20 = arith.extui %19 : i1 to i32
    %c0_i32_19 = arith.constant 0 : i32
    %21 = arith.cmpi ne, %20, %c0_i32_19 : i32
    scf.if %21 {
      %c0_20 = arith.constant 0 : index
      %c0_21 = arith.constant 0 : index
      %c0_22 = arith.constant 0 : index
      %22 = vector.load %arg9[%c0_20, %c0_21, %c0_22] : memref<2x4x128xf32, #tpu.memory_space<vmem>>, vector<2x4x128xf32>
      %cst = arith.constant dense<0.000000e+00> : vector<2x4xf32>
      %23 = vector.multi_reduction <add>, %22, %cst [2] : vector<2x4x128xf32> to vector<2x4xf32>
      %c0_23 = arith.constant 0 : index
      %c0_24 = arith.constant 0 : index
      %c0_25 = arith.constant 0 : index
      %24 = vector.load %arg10[%c0_23, %c0_24, %c0_25] : memref<2x4x128xf32, #tpu.memory_space<vmem>>, vector<2x4x128xf32>
      %cst_26 = arith.constant dense<0xFF800000> : vector<2x4xf32>
      %25 = vector.multi_reduction <maximumf>, %24, %cst_26 [2] : vector<2x4x128xf32> to vector<2x4xf32>
      %cst_27 = arith.constant 3.906250e-03 : f32
      %26 = vector.broadcast %cst_27 : f32 to vector<2x4xf32>
      %27 = arith.mulf %23, %26 : vector<2x4xf32>
      %28 = arith.addf %27, %25 : vector<2x4xf32>
      %c0_28 = arith.constant 0 : index
      %c0_29 = arith.constant 0 : index
      %29 = vector.load %arg3[%c0_28, %c0_29] : memref<4x2xf32, #tpu.memory_space<vmem>>, vector<4x2xf32>
      %cst_30 = arith.constant dense<0.000000e+00> : vector<2x2xf32>
      %30 = tpu.matmul %28, %29, %cst_30 {dimension_numbers = #tpu.dot_dimension_numbers<[1], [0], [0], [1], [0, 0, 1, 1], [], []>} : vector<2x4xf32>, vector<4x2xf32>, vector<2x2xf32> -> vector<2x2xf32>
      %c0_31 = arith.constant 0 : index
      %c0_32 = arith.constant 0 : index
      %31 = vector.load %arg4[%c0_31, %c0_32] : memref<1x2xf32, #tpu.memory_space<vmem>>, vector<1x2xf32>
      %cst_33 = arith.constant 2.000000e+00 : f32
      %32 = vector.broadcast %cst_33 : f32 to vector<1x2xf32>
      %33 = arith.mulf %32, %31 : vector<1x2xf32>
      %34 = vector.broadcast %33 : vector<1x2xf32> to vector<2x2xf32>
      %35 = arith.addf %30, %34 : vector<2x2xf32>
      %c0_34 = arith.constant 0 : index
      %c0_35 = arith.constant 0 : index
      %36 = vector.load %arg5[%c0_34, %c0_35] : memref<2x8xf32, #tpu.memory_space<vmem>>, vector<2x8xf32>
      %cst_36 = arith.constant dense<0.000000e+00> : vector<2x8xf32>
      %37 = tpu.matmul %35, %36, %cst_36 {dimension_numbers = #tpu.dot_dimension_numbers<[1], [0], [0], [1], [0, 0, 1, 1], [], []>} : vector<2x2xf32>, vector<2x8xf32>, vector<2x8xf32> -> vector<2x8xf32>
      %c0_37 = arith.constant 0 : index
      %c0_38 = arith.constant 0 : index
      %38 = vector.load %arg6[%c0_37, %c0_38] : memref<1x8xf32, #tpu.memory_space<vmem>>, vector<1x8xf32>
      %39 = vector.broadcast %38 : vector<1x8xf32> to vector<2x8xf32>
      %40 = arith.addf %37, %39 : vector<2x8xf32>
      %41 = vector.extract_strided_slice %40 {offsets = [0, 0], sizes = [2, 4], strides = [1, 1]} : vector<2x8xf32> to vector<2x4xf32>
      %cst_39 = arith.constant dense<0xFF800000> : vector<2xf32>
      %42 = vector.multi_reduction <maximumf>, %41, %cst_39 [1] : vector<2x4xf32> to vector<2xf32>
      %43 = vector.shape_cast %42 : vector<2xf32> to vector<2x1xf32>
      %44 = vector.broadcast %43 : vector<2x1xf32> to vector<2x4xf32>
      %45 = arith.subf %41, %44 : vector<2x4xf32>
      %46 = math.exp %45 : vector<2x4xf32>
      %cst_40 = arith.constant dense<0.000000e+00> : vector<2xf32>
      %47 = vector.multi_reduction <add>, %46, %cst_40 [1] : vector<2x4xf32> to vector<2xf32>
      %48 = vector.shape_cast %47 : vector<2xf32> to vector<2x1xf32>
      %49 = tpu.reciprocal %48 : vector<2x1xf32> -> vector<2x1xf32>
      %50 = vector.broadcast %49 : vector<2x1xf32> to vector<2x4xf32>
      %51 = arith.mulf %46, %50 : vector<2x4xf32>
      %c0_41 = arith.constant 0 : index
      %c0_42 = arith.constant 0 : index
      %52 = vector.load %arg7[%c0_41, %c0_42] : memref<2x4xf32, #tpu.memory_space<vmem>>, vector<2x4xf32>
      tpu.vector_store %arg7[%c0_41, %c0_42], %51 {strides = array<i32>} : memref<2x4xf32, #tpu.memory_space<vmem>>, vector<2x4xf32>,
      %53 = vector.extract_strided_slice %40 {offsets = [0, 4], sizes = [2, 4], strides = [1, 1]} : vector<2x8xf32> to vector<2x4xf32>
      %cst_43 = arith.constant dense<0xFF800000> : vector<2xf32>
      %54 = vector.multi_reduction <maximumf>, %53, %cst_43 [1] : vector<2x4xf32> to vector<2xf32>
      %55 = vector.shape_cast %54 : vector<2xf32> to vector<2x1xf32>
      %56 = vector.broadcast %55 : vector<2x1xf32> to vector<2x4xf32>
      %57 = arith.subf %53, %56 : vector<2x4xf32>
      %58 = math.exp %57 : vector<2x4xf32>
      %cst_44 = arith.constant dense<0.000000e+00> : vector<2xf32>
      %59 = vector.multi_reduction <add>, %58, %cst_44 [1] : vector<2x4xf32> to vector<2xf32>
      %60 = vector.shape_cast %59 : vector<2xf32> to vector<2x1xf32>
      %61 = tpu.reciprocal %60 : vector<2x1xf32> -> vector<2x1xf32>
      %62 = vector.broadcast %61 : vector<2x1xf32> to vector<2x4xf32>
      %63 = arith.mulf %58, %62 : vector<2x4xf32>
      %c0_45 = arith.constant 0 : index
      %c0_46 = arith.constant 0 : index
      %64 = vector.load %arg8[%c0_45, %c0_46] : memref<2x4xf32, #tpu.memory_space<vmem>>, vector<2x4xf32>
      tpu.vector_store %arg8[%c0_45, %c0_46], %63 {strides = array<i32>} : memref<2x4xf32, #tpu.memory_space<vmem>>, vector<2x4xf32>,
    } else {
    }
    return
  }
  func.func @transform_0(%arg0: i32, %arg1: i32) -> (i32, i32, i32) {
    %c0_i32 = arith.constant 0 : i32
    %c0_i32_0 = arith.constant 0 : i32
    return %arg0, %c0_i32, %arg1 : i32, i32, i32
  }
  func.func @transform_1(%arg0: i32, %arg1: i32) -> (i32, i32) {
    %c0_i32 = arith.constant 0 : i32
    %c0_i32_0 = arith.constant 0 : i32
    %c0_i32_1 = arith.constant 0 : i32
    return %c0_i32, %c0_i32_0 : i32, i32
  }
  func.func @transform_2(%arg0: i32, %arg1: i32) -> (i32, i32) {
    %c0_i32 = arith.constant 0 : i32
    %c0_i32_0 = arith.constant 0 : i32
    %c0_i32_1 = arith.constant 0 : i32
    return %c0_i32, %c0_i32_0 : i32, i32
  }
  func.func @transform_3(%arg0: i32, %arg1: i32) -> (i32, i32) {
    %c0_i32 = arith.constant 0 : i32
    %c0_i32_0 = arith.constant 0 : i32
    %c0_i32_1 = arith.constant 0 : i32
    return %c0_i32, %c0_i32_0 : i32, i32
  }
  func.func @transform_4(%arg0: i32, %arg1: i32) -> (i32, i32) {
    %c0_i32 = arith.constant 0 : i32
    %c0_i32_0 = arith.constant 0 : i32
    %c0_i32_1 = arith.constant 0 : i32
    return %c0_i32, %c0_i32_0 : i32, i32
  }
  func.func @transform_5(%arg0: i32, %arg1: i32) -> (i32, i32) {
    %c0_i32 = arith.constant 0 : i32
    %c0_i32_0 = arith.constant 0 : i32
    return %arg0, %c0_i32 : i32, i32
  }
  func.func @transform_6(%arg0: i32, %arg1: i32) -> (i32, i32) {
    %c0_i32 = arith.constant 0 : i32
    %c0_i32_0 = arith.constant 0 : i32
    return %arg0, %c0_i32 : i32, i32
  }
}

</mosaic_0001>

<llo_original>
// kernel: tpu_custom_call.1
$region0: #{tpu_custom_call.1}
  #allocation0 [shape = 'u32[]', space=smem, size = 0x4, offset = 0x4, fixed_abs, tag = 'smem constant byte address 0x4 - core index']
  #allocation1 [shape = 'u32[144,128]{1,0:T(1,128)}', space=vmem, size = 0x12000, scoped, tag = 'internal scratch']
  #allocation2 [shape = 'f32[2,4,128]{2,1,0:T(4,128)}', space=vmem, size = 0x1000, scoped, tag = 'scratch operand']
  #allocation3 [shape = 'f32[2,4,128]{2,1,0:T(4,128)}', space=vmem, size = 0x1000, scoped, tag = 'scratch operand']
  %s0 = inlined_call_operand.hbm [shape: f32[2,4,256], index: 0, kind: input, shape index: {}]
  %s1 = inlined_call_operand.vmem [shape: f32[4,2], index: 1, kind: input, shape index: {}]
  %s2 = inlined_call_operand.vmem [shape: f32[1,2], index: 2, kind: input, shape index: {}]
  %s3 = inlined_call_operand.vmem [shape: f32[2,8], index: 3, kind: input, shape index: {}]
  %s4 = inlined_call_operand.vmem [shape: f32[1,8], index: 4, kind: input, shape index: {}]
  %s5 = inlined_call_operand.hbm [shape: f32[2,4], index: 5, kind: output, shape index: {0}]
  %s6 = inlined_call_operand.hbm [shape: f32[2,4], index: 6, kind: output, shape index: {1}]
  %7 = xla_tuple %s5, %s6
  %s8 = sld [smem:[#allocation0]]
  $region50: #{tpu_custom_call.1} parent=0
    _
  %s10 = ssub.s32 1, %s8
  %s11 = scalar_select 0, %s10, %s8
  $region1: #{tpu_custom_call.1} parent=0
    #allocation4 [shape = 'u8[8192]{0}', space=vmem, size = 0x2000, scoped, tag = 'input window, operand 0, single buffered']
    #allocation5 [shape = 's32[1]{0}', space=sflag, size = 0x4, scoped, tag = 'scoped memory for tpu_custom_call.1']
    #allocation6 [shape = 's32[1]{0}', space=sflag, size = 0x4, scoped, tag = 'scoped memory for tpu_custom_call.1']
    #allocation7 [shape = 'u8[1024]{0}', space=vmem, size = 0x400, scoped, tag = 'output window, operand 0, single buffered']
    #allocation8 [shape = 'u8[1024]{0}', space=vmem, size = 0x400, scoped, tag = 'output window, operand 1, single buffered']
    #allocation9 [shape = 's32[1]{0}', space=sflag, size = 0x4, scoped, tag = 'scoped memory for tpu_custom_call.1']
    %12 = vsyncpa [#allocation5], 0
    %13 = vsyncpa [#allocation6], 0
    %14 = vsyncpa [#allocation9], 0
    // Predicated region
    $region2: #{tpu_custom_call.1} parent=1 // pred_check
      _
    $region3: #{tpu_custom_call.1} parent=1 // pred_check_branch
      %16 = sbr.rel (0) target = $region5
    $region4: #{tpu_custom_call.1} parent=1 // pred_region
      %s18 = ssub.s32 256, 256
      %19 = vsyncadd [#allocation5], %s18
      %s20 = sshll.u32 [#allocation4], 4
      %s21 = int_to_ptr.vmem [resolvable:$true] %s20
      %26 = dma.hbm_to_vmem [thread:$0]  %s0, 256, %s21, [#allocation5], 128, 128, 8
    $region5: #{tpu_custom_call.1} parent=1 // pred_fallthru
      _
    // Predicated region
    $region6: #{tpu_custom_call.1} parent=1 // pred_check
      _
    $region7: #{tpu_custom_call.1} parent=1 // pred_check_branch
      %28 = sbr.rel (0) target = $region9
    $region8: #{tpu_custom_call.1} parent=1 // pred_region
      _
    $region9: #{tpu_custom_call.1} parent=1 // pred_fallthru
      _
    // Predicated region
    $region10: #{tpu_custom_call.1} parent=1 // pred_check
      _
    $region11: #{tpu_custom_call.1} parent=1 // pred_check_branch
      %30 = sbr.rel (0) target = $region13
    $region12: #{tpu_custom_call.1} parent=1 // pred_region
      _
    $region13: #{tpu_custom_call.1} parent=1 // pred_fallthru
      _
    // Predicated region
    $region14: #{tpu_custom_call.1} parent=1 // pred_check
      _
    $region15: #{tpu_custom_call.1} parent=1 // pred_check_branch
      %32 = sbr.rel (0) target = $region17
    $region16: #{tpu_custom_call.1} parent=1 // pred_region
      _
    $region17: #{tpu_custom_call.1} parent=1 // pred_fallthru
      _
    // Predicated region
    $region18: #{tpu_custom_call.1} parent=1 // pred_check
      _
    $region19: #{tpu_custom_call.1} parent=1 // pred_check_branch
      %34 = sbr.rel (0) target = $region21
    $region20: #{tpu_custom_call.1} parent=1 // pred_region
      _
    $region21: #{tpu_custom_call.1} parent=1 // pred_fallthru
      _
    // Predicated region
    $region22: #{tpu_custom_call.1} parent=1 // pred_check
      _
    $region23: #{tpu_custom_call.1} parent=1 // pred_check_branch
      %36 = sbr.rel (0) target = $region25
    $region24: #{tpu_custom_call.1} parent=1 // pred_region
      %37 = dma.done [#allocation5], 256
    $region25: #{tpu_custom_call.1} parent=1 // pred_fallthru
      _
    %p38 = scmp.eq.s32.totalorder 0, 0
    // Predicated region
    $region26: #{tpu_custom_call.1} parent=1 // pred_check
      %p39 = pneg %p38
    $region27: #{tpu_custom_call.1} parent=1 // pred_check_branch
      %41 = sbr.rel (%p39) target = $region29
    $region28: #{tpu_custom_call.1} parent=1 // pred_region
      %42 = vst [vmem:[#allocation2] sm:$0xf] 0.0
      %43 = vst [vmem:[#allocation2 + $0x4] sm:$0xf] 0.0
      %44 = vst [vmem:[#allocation3] sm:$0xf] -inf
      %45 = vst [vmem:[#allocation3 + $0x4] sm:$0xf] -inf
    $region29: #{tpu_custom_call.1} parent=1 // pred_fallthru
      _
    %v46 = vld [vmem:[#allocation2] sm:$0xf]
    %v47 = vld [vmem:[#allocation2 + $0x4] sm:$0xf]
    %v48 = vld [vmem:[#allocation3] sm:$0xf]
    %v49 = vld [vmem:[#allocation3 + $0x4] sm:$0xf]
    %v50 = vld [vmem:[#allocation4] sm:$0xf]
    %v51 = vld [vmem:[#allocation4 + $0x8] sm:$0xf]
    %v52 = vadd.f32 %v46, %v50
    %v53 = vadd.f32 %v47, %v51
    %v54 = vmax.f32 %v48, %v50
    %v55 = vmax.f32 %v49, %v51
    %s56 = scalar_lea.vmem [#allocation4], 4
    %v57 = vld [vmem:[%s56] sm:$0xf]
    %v58 = vld [vmem:[%s56 + $0x8] sm:$0xf]
    %v59 = vadd.f32 %v52, %v57
    %v60 = vadd.f32 %v53, %v58
    %v61 = vmax.f32 %v54, %v57
    %v62 = vmax.f32 %v55, %v58
    %63 = vst [vmem:[#allocation2] sm:$0xf] %v59
    %64 = vst [vmem:[#allocation2 + $0x4] sm:$0xf] %v60
    %65 = vst [vmem:[#allocation3] sm:$0xf] %v61
    %66 = vst [vmem:[#allocation3 + $0x4] sm:$0xf] %v62
    // Predicated region
    $region30: #{tpu_custom_call.1} parent=1 // pred_check
      %p67 = pneg %p38
    $region31: #{tpu_custom_call.1} parent=1 // pred_check_branch
      %69 = sbr.rel (%p67) target = $region33
    $region32: #{tpu_custom_call.1} parent=1 // pred_region
      %v70 = vld [vmem:[#allocation2] sm:$0xf]
      %v71 = vld [vmem:[#allocation2 + $0x4] sm:$0xf]
      %vm72 = vcmask 1043456
      %v73 = vsel %vm72, %v70, 0.0
      %74 = vadd.xlane.f32.xlu0 %v73
      %v75 = vpop.xlane.xlu0 %74
      %v76 = vsel %vm72, %v71, 0.0
      %77 = vadd.xlane.f32.xlu0 %v76
      %v78 = vpop.xlane.xlu0 %77
      %v79 = vld [vmem:[#allocation3] sm:$0xf]
      %v80 = vld [vmem:[#allocation3 + $0x4] sm:$0xf]
      %v81 = vsel %vm72, %v79, -inf
      %82 = vmax.xlane.f32.xlu0 %v81
      %v83 = vpop.xlane.xlu0 %82
      %v84 = vsel %vm72, %v80, -inf
      %85 = vmax.xlane.f32.xlu0 %v84
      %v86 = vpop.xlane.xlu0 %85
      %v87 = vmul.f32 %v75, 0.00390625
      %v88 = vmul.f32 %v78, 0.00390625
      %v89 = vadd.f32 %v87, %v83
      %v90 = vadd.f32 %v88, %v86
      %v91 = vld [vmem:[%s1] sm:$0xf]
      %v92 = vld [vmem:[%s2] sm:$0x1]
      %v93 = vmul.f32 %v92, 2.0
      %v95 = vlaneseq
      %v96 = vshrl.u32 %v95, 7
      %v97 = vsub.s32 0, %v96
      %v98 = vrot.slane %v93, %v97
      %v102 = vlaneseq
      %v103 = vand.u32 %v102, 127
      %v104 = vlaneseq
      %v105 = vshrl.u32 %v104, 7
      %v106 = vsub.s32 %v103, %v105
      %v107 = vrot.slane %v89, %v106
      %v108 = vlaneseq
      %v109 = vshrl.u32 %v108, 7
      %v110 = vsub.s32 %v103, %v109
      %v111 = vrot.slane %v90, %v110
      %vm112 = vcmask 1041409
      %v113 = vsel %vm112, %v111, %v107
      %vm114 = vcmask 31744
      %v115 = vsel %vm114, %v113, 0
      %v118 = vsel %vm72, %v91, 0
      %120 = vmatprep.subr.mxu0 0.0
      %121 = vmatpush1.msra.mxu0 0.0
      %122 = vmatprep.subr.mxu0 0.0
      %123 = vmatpush1.msra.mxu0 0.0
      %124 = vmatprep.subr.mxu0 0.0
      %125 = vmatpush1.msra.mxu0 0.0
      %126 = vmatprep.subr.mxu0 0.0
      %127 = vmatpush1.msra.mxu0 0.0
      %128 = vmatprep.subr.mxu0 0.0
      %129 = vmatpush1.msra.mxu0 0.0
      %130 = vmatprep.subr.mxu0 0.0
      %131 = vmatpush1.msra.mxu0 0.0
      %132 = vmatprep.subr.mxu0 0.0
      %133 = vmatpush1.msra.mxu0 0.0
      %134 = vmatprep.subr.mxu0 0.0
      %135 = vmatpush1.msra.mxu0 0.0
      %136 = vmatprep.subr.mxu0 0.0
      %137 = vmatpush1.msra.mxu0 0.0
      %138 = vmatprep.subr.mxu0 0.0
      %139 = vmatpush1.msra.mxu0 0.0
      %140 = vmatprep.subr.mxu0 0.0
      %141 = vmatpush1.msra.mxu0 0.0
      %142 = vmatprep.subr.mxu0 0.0
      %143 = vmatpush1.msra.mxu0 0.0
      %144 = vmatprep.subr.mxu0 0.0
      %145 = vmatpush1.msra.mxu0 0.0
      %146 = vmatprep.subr.mxu0 0.0
      %147 = vmatpush1.msra.mxu0 0.0
      %148 = vmatprep.subr.mxu0 0.0
      %149 = vmatpush1.msra.mxu0 0.0
      %150 = vmatprep.subr.mxu0 0.0
      %151 = vmatpush1.msra.mxu0 %v118
      %152 = vmatprep.subr.mxu0 0.0
      %153 = vmatpush2.msra.mxu0 0.0
      %154 = vmatprep.subr.mxu0 0.0
      %155 = vmatpush2.msra.mxu0 0.0
      %156 = vmatprep.subr.mxu0 0.0
      %157 = vmatpush2.msra.mxu0 0.0
      %158 = vmatprep.subr.mxu0 0.0
      %159 = vmatpush2.msra.mxu0 0.0
      %160 = vmatprep.subr.mxu0 0.0
      %161 = vmatpush2.msra.mxu0 0.0
      %162 = vmatprep.subr.mxu0 0.0
      %163 = vmatpush2.msra.mxu0 0.0
      %164 = vmatprep.subr.mxu0 0.0
      %165 = vmatpush2.msra.mxu0 0.0
      %166 = vmatprep.subr.mxu0 0.0
      %167 = vmatpush2.msra.mxu0 0.0
      %168 = vmatprep.subr.mxu0 0.0
      %169 = vmatpush2.msra.mxu0 0.0
      %170 = vmatprep.subr.mxu0 0.0
      %171 = vmatpush2.msra.mxu0 0.0
      %172 = vmatprep.subr.mxu0 0.0
      %173 = vmatpush2.msra.mxu0 0.0
      %174 = vmatprep.subr.mxu0 0.0
      %175 = vmatpush2.msra.mxu0 0.0
      %176 = vmatprep.subr.mxu0 0.0
      %177 = vmatpush2.msra.mxu0 0.0
      %178 = vmatprep.subr.mxu0 0.0
      %179 = vmatpush2.msra.mxu0 0.0
      %180 = vmatprep.subr.mxu0 0.0
      %181 = vmatpush2.msra.mxu0 0.0
      %182 = vmatprep.subr.mxu0 0.0
      %183 = vmatpush2.msra.mxu0 0.0
      %184 = vmatprep.mubr.f32.mxu0 0.0
      %185 = vmatmul.mubr.f32.gmra.mxu0 %v115
      %v186 = vpop.f32.mrf.mxu0
      %v187 = vadd.f32 %v98, %v186
      %v188 = vpop.f32.mrf.mxu0
      %189 = vdwg.mxu0
      %v190 = vld [vmem:[%s3] sm:$0x3]
      %v191 = vld [vmem:[%s4] sm:$0x1]
      %v193 = vlaneseq
      %v194 = vshrl.u32 %v193, 7
      %v195 = vsub.s32 0, %v194
      %v196 = vrot.slane %v191, %v195
      %vm198 = vcmask 15360
      %v200 = vsel %vm198, %v187, 0
      %vm202 = vcmask 1041408
      %v204 = vsel %vm202, %v190, 0
      %206 = vmatprep.subr.mxu0 0.0
      %207 = vmatpush1.msra.mxu0 0.0
      %208 = vmatprep.subr.mxu0 0.0
      %209 = vmatpush1.msra.mxu0 0.0
      %210 = vmatprep.subr.mxu0 0.0
      %211 = vmatpush1.msra.mxu0 0.0
      %212 = vmatprep.subr.mxu0 0.0
      %213 = vmatpush1.msra.mxu0 0.0
      %214 = vmatprep.subr.mxu0 0.0
      %215 = vmatpush1.msra.mxu0 0.0
      %216 = vmatprep.subr.mxu0 0.0
      %217 = vmatpush1.msra.mxu0 0.0
      %218 = vmatprep.subr.mxu0 0.0
      %219 = vmatpush1.msra.mxu0 0.0
      %220 = vmatprep.subr.mxu0 0.0
      %221 = vmatpush1.msra.mxu0 0.0
      %222 = vmatprep.subr.mxu0 0.0
      %223 = vmatpush1.msra.mxu0 0.0
      %224 = vmatprep.subr.mxu0 0.0
      %225 = vmatpush1.msra.mxu0 0.0
      %226 = vmatprep.subr.mxu0 0.0
      %227 = vmatpush1.msra.mxu0 0.0
      %228 = vmatprep.subr.mxu0 0.0
      %229 = vmatpush1.msra.mxu0 0.0
      %230 = vmatprep.subr.mxu0 0.0
      %231 = vmatpush1.msra.mxu0 0.0
      %232 = vmatprep.subr.mxu0 0.0
      %233 = vmatpush1.msra.mxu0 0.0
      %234 = vmatprep.subr.mxu0 0.0
      %235 = vmatpush1.msra.mxu0 0.0
      %236 = vmatprep.subr.mxu0 0.0
      %237 = vmatpush1.msra.mxu0 %v204
      %238 = vmatprep.subr.mxu0 0.0
      %239 = vmatpush2.msra.mxu0 0.0
      %240 = vmatprep.subr.mxu0 0.0
      %241 = vmatpush2.msra.mxu0 0.0
      %242 = vmatprep.subr.mxu0 0.0
      %243 = vmatpush2.msra.mxu0 0.0
      %244 = vmatprep.subr.mxu0 0.0
      %245 = vmatpush2.msra.mxu0 0.0
      %246 = vmatprep.subr.mxu0 0.0
      %247 = vmatpush2.msra.mxu0 0.0
      %248 = vmatprep.subr.mxu0 0.0
      %249 = vmatpush2.msra.mxu0 0.0
      %250 = vmatprep.subr.mxu0 0.0
      %251 = vmatpush2.msra.mxu0 0.0
      %252 = vmatprep.subr.mxu0 0.0
      %253 = vmatpush2.msra.mxu0 0.0
      %254 = vmatprep.subr.mxu0 0.0
      %255 = vmatpush2.msra.mxu0 0.0
      %256 = vmatprep.subr.mxu0 0.0
      %257 = vmatpush2.msra.mxu0 0.0
      %258 = vmatprep.subr.mxu0 0.0
      %259 = vmatpush2.msra.mxu0 0.0
      %260 = vmatprep.subr.mxu0 0.0
      %261 = vmatpush2.msra.mxu0 0.0
      %262 = vmatprep.subr.mxu0 0.0
      %263 = vmatpush2.msra.mxu0 0.0
      %264 = vmatprep.subr.mxu0 0.0
      %265 = vmatpush2.msra.mxu0 0.0
      %266 = vmatprep.subr.mxu0 0.0
      %267 = vmatpush2.msra.mxu0 0.0
      %268 = vmatprep.subr.mxu0 0.0
      %269 = vmatpush2.msra.mxu0 0.0
      %270 = vmatprep.mubr.f32.mxu0 0.0
      %271 = vmatmul.mubr.f32.gmra.mxu0 %v200
      %v272 = vpop.f32.mrf.mxu0
      %v273 = vadd.f32 %v196, %v272
      %v274 = vpop.f32.mrf.mxu0
      %275 = vdwg.mxu0
      %vm276 = vcmask 25600
      %v277 = vsel %vm276, %v273, -inf
      %278 = vmax.xlane.f32.xlu0 %v277
      %v279 = vpop.xlane.xlu0 %278
      %v280 = vsub.f32 %v273, %v279
      %v281 = vmul.f32 %v280, 1.442695
      %v282 = vpow.pop %v281
      %v283 = vsel %vm276, %v282, 0.0
      %284 = vadd.xlane.f32.xlu0 %v283
      %v285 = vpop.xlane.xlu0 %284
      %v286 = vrcp.pop %v285
      %v287 = vmul.f32 %v282, %v286
      %288 = vst.msk [vmem:[#allocation7] sm:$0x3] %vm276, %v287
      %vm289 = vcmask 58400
      %v290 = vsel %vm289, %v273, -inf
      %291 = vmax.xlane.f32.xlu0 %v290
      %v292 = vpop.xlane.xlu0 %291
      %v293 = vsub.f32 %v273, %v292
      %v294 = vmul.f32 %v293, 1.442695
      %v295 = vpow.pop %v294
      %297 = vrot.lane.b32.xlu0 %v295, 124
      %v298 = vpop.permute.xlu0 %297
      %v300 = vsel %vm276, %v298, 0.0
      %301 = vadd.xlane.f32.xlu0 %v300
      %v302 = vpop.xlane.xlu0 %301
      %v303 = vrcp.pop %v302
      %v304 = vmul.f32 %v295, %v303
      %306 = vrot.lane.b32.xlu0 %v304, 124
      %v307 = vpop.permute.xlu0 %306
      %309 = vst.msk [vmem:[#allocation8] sm:$0x3] %vm276, %v307
    $region33: #{tpu_custom_call.1} parent=1 // pred_fallthru
      _
    // Predicated region
    $region34: #{tpu_custom_call.1} parent=1 // pred_check
      _
    $region35: #{tpu_custom_call.1} parent=1 // pred_check_branch
      %311 = sbr.rel (0) target = $region37
    $region36: #{tpu_custom_call.1} parent=1 // pred_region
      %s313 = ssub.s32 32, 32
      %314 = vsyncadd [#allocation6], %s313
      %s316 = sshll.u32 [#allocation7], 4
      %s317 = int_to_ptr.vmem [resolvable:$true] %s316
      %319 = dma.vmem_to_hbm [thread:$0]  %s317, 32, %s5, [#allocation6]
    $region37: #{tpu_custom_call.1} parent=1 // pred_fallthru
      _
    // Predicated region
    $region38: #{tpu_custom_call.1} parent=1 // pred_check
      _
    $region39: #{tpu_custom_call.1} parent=1 // pred_check_branch
      %321 = sbr.rel (0) target = $region41
    $region40: #{tpu_custom_call.1} parent=1 // pred_region
      %s323 = ssub.s32 32, 32
      %324 = vsyncadd [#allocation9], %s323
      %s326 = sshll.u32 [#allocation8], 4
      %s327 = int_to_ptr.vmem [resolvable:$true] %s326
      %329 = dma.vmem_to_hbm [thread:$0]  %s327, 32, %s6, [#allocation9]
    $region41: #{tpu_custom_call.1} parent=1 // pred_fallthru
      _
    // Predicated region
    $region42: #{tpu_custom_call.1} parent=1 // pred_check
      _
    $region43: #{tpu_custom_call.1} parent=1 // pred_check_branch
      %331 = sbr.rel (0) target = $region45
    $region44: #{tpu_custom_call.1} parent=1 // pred_region
      %332 = dma.done [#allocation6], 32
    $region45: #{tpu_custom_call.1} parent=1 // pred_fallthru
      _
    // Predicated region
    $region46: #{tpu_custom_call.1} parent=1 // pred_check
      _
    $region47: #{tpu_custom_call.1} parent=1 // pred_check_branch
      %334 = sbr.rel (0) target = $region49
    $region48: #{tpu_custom_call.1} parent=1 // pred_region
      %335 = dma.done [#allocation9], 32
    $region49: #{tpu_custom_call.1} parent=1 // pred_fallthru
      _
    %336 = vsyncpa [#allocation5], 1
    %337 = vsyncpa [#allocation6], 1
    %338 = vsyncpa [#allocation9], 1

</llo_original>
